<compile_context>
chip_gen: v5e
topology: v5e:2x2
jax: 0.10.0
libtpu: 0.0.40
codegen_flags: <defaults>
</compile_context>

<pallas_src>
import functools

import jax
import jax.numpy as jnp
from jax.experimental import pallas as pl
from jax.experimental.pallas import tpu as pltpu


def _postprocess_kernel(db_ref, bx_ref, sc_ref, obx_ref, opr_ref,
                        *, scale_xy, scale_wh):
    # db_ref : (4, TP)       default boxes (cx, cy, w, h), priors on lanes
    # bx_ref : (NB, 4, TP)   predicted regression params (xywh), native dtype
    # sc_ref : (NB, C, TP)   class logits, native dtype
    # obx_ref: (NB, 4, TP)   decoded ltrb boxes
    # opr_ref: (NB, C, TP)   softmax probabilities over classes
    db = db_ref[...].astype(jnp.float32)                        # (4, TP)
    bx = bx_ref[...].astype(jnp.float32)                        # (NB, 4, TP)

    # xywh regression -> absolute xywh (default boxes broadcast over batch)
    xy = scale_xy * bx[:, 0:2, :] * db[2:4, :] + db[0:2, :]     # (NB, 2, TP)
    wh = jnp.exp(scale_wh * bx[:, 2:4, :]) * db[2:4, :]         # (NB, 2, TP)

    # xywh -> ltrb, written by halves (no concatenate temp)
    obx_ref[:, 0:2, :] = (xy - 0.5 * wh).astype(obx_ref.dtype)  # (l, t)
    obx_ref[:, 2:4, :] = (xy + 0.5 * wh).astype(obx_ref.dtype)  # (r, b)

    # softmax over the class (sublane) axis
    s = sc_ref[...].astype(jnp.float32)                         # (NB, C, TP)
    m = jnp.max(s, axis=1, keepdims=True)
    e = jnp.exp(s - m)
    denom = jnp.sum(e, axis=1, keepdims=True)
    opr_ref[...] = (e * pl.reciprocal(denom, approx=False)).astype(opr_ref.dtype)


def _round_up(x, m):
    return ((x + m - 1) // m) * m


def _sublane_tile(dtype):
    # f32 -> 8, bf16 -> 16, int8/fp8 -> 32 sublanes per native tile
    return 8 * (4 // jnp.dtype(dtype).itemsize)


def _padded_rows(rows, dtype):
    return _round_up(rows, _sublane_tile(dtype))


def _choose_tiling(N, P, step_bytes_per_prior, *, max_tile_p,
                   target_step_bytes, min_grid_steps):
    """Pick (block_n, tile_p): tile_p is a multiple of 128, each grid step
    moves roughly target_step_bytes of (sublane-padded) HBM traffic, and the
    grid keeps >= min_grid_steps steps (v7x: two TensorCores share the grid)."""
    tile_p = min(_round_up(P, 128), _round_up(max_tile_p, 128))
    # shrink the lane tile until one batch item per step fits the target
    while tile_p > 128 and tile_p * step_bytes_per_prior > target_step_bytes:
        tile_p = _round_up(pl.cdiv(tile_p, 2), 128)
    per_item = tile_p * step_bytes_per_prior
    block_n = int(max(1, min(N, target_step_bytes // max(per_item, 1))))
    # keep enough grid steps for megacore / both v7x TensorCores
    while pl.cdiv(N, block_n) * pl.cdiv(P, tile_p) < min_grid_steps:
        if pl.cdiv(P, tile_p) < min_grid_steps and tile_p > 128:
            tile_p = _round_up(pl.cdiv(tile_p, 2), 128)
        elif block_n > 1:
            block_n = pl.cdiv(block_n, 2)
        else:
            break
    return block_n, tile_p


def scale_back_batch_pallas(bboxes_in, scores_in, dboxes_xywh,
                            scale_xy=0.1, scale_wh=0.2, *,
                            out_dtype=None, max_tile_p=8192,
                            target_step_bytes=4 << 20, min_grid_steps=2,
                            channel_last=False):
    """bboxes_in: [N, 4, P], scores_in: [N, C, P], dboxes_xywh: [1, P, 4].

    Returns (bboxes_ltrb, probs).  By default these keep the lane-dense
    channel-first [N, 4, P] / [N, C, P] layout (the PyTorch permute is layout
    glue for the NMS consumer) and the input dtypes (bf16 in -> bf16 out).
    Pass channel_last=True for [N, P, 4] / [N, P, C]; pass out_dtype to force
    a specific output dtype (e.g. jnp.float32).
    """
    N, four, P = bboxes_in.shape
    assert four == 4
    assert scores_in.shape[0] == N and scores_in.shape[2] == P
    C = scores_in.shape[1]

    box_out_dt = jnp.dtype(out_dtype if out_dtype is not None else bboxes_in.dtype)
    prob_out_dt = jnp.dtype(out_dtype if out_dtype is not None else scores_in.dtype)

    # padded bytes moved per (batch item, prior): inputs + outputs
    step_bytes_per_prior = (
        _padded_rows(4, bboxes_in.dtype) * jnp.dtype(bboxes_in.dtype).itemsize
        + _padded_rows(C, scores_in.dtype) * jnp.dtype(scores_in.dtype).itemsize
        + _padded_rows(4, box_out_dt) * box_out_dt.itemsize
        + _padded_rows(C, prob_out_dt) * prob_out_dt.itemsize)

    # keep double-buffered blocks comfortably inside the 32 MiB vmem cap
    target_step_bytes = min(int(target_step_bytes), 12 << 20)
    block_n, tile_p = _choose_tiling(
        N, P, step_bytes_per_prior, max_tile_p=max_tile_p,
        target_step_bytes=target_step_bytes, min_grid_steps=min_grid_steps)

    # Small one-time (4, P) transpose of the default boxes; stays f32.
    db = jnp.transpose(dboxes_xywh[0], (1, 0)).astype(jnp.float32)  # (4, P)

    kernel = functools.partial(_postprocess_kernel,
                               scale_xy=scale_xy, scale_wh=scale_wh)

    # VMEM: double-buffered per-step blocks (in + out + default-box tile).
    step_bytes = block_n * tile_p * step_bytes_per_prior
    db_bytes = _padded_rows(4, jnp.float32) * tile_p * 4
    need = 2 * (step_bytes + db_bytes)
    vmem_limit = int(min(32 << 20, max(2 * need, 16 << 20)))  # v7x: well under 64 MiB/TC

    grid = (pl.cdiv(N, block_n), pl.cdiv(P, tile_p))
    out_bx, out_pr = pl.pallas_call(
        kernel,
        out_shape=(
            jax.ShapeDtypeStruct((N, 4, P), box_out_dt),
            jax.ShapeDtypeStruct((N, C, P), prob_out_dt),
        ),
        grid_spec=pltpu.PrefetchScalarGridSpec(
            num_scalar_prefetch=0,
            grid=grid,
            in_specs=[
                # default boxes: lane-tiled, broadcast over the batch axis
                pl.BlockSpec((4, tile_p), lambda i, j: (0, j)),
                # predicted boxes / scores: native dtype, batch-folded blocks
                pl.BlockSpec((block_n, 4, tile_p), lambda i, j: (i, 0, j)),
                pl.BlockSpec((block_n, C, tile_p), lambda i, j: (i, 0, j)),
            ],
            out_specs=[
                pl.BlockSpec((block_n, 4, tile_p), lambda i, j: (i, 0, j)),
                pl.BlockSpec((block_n, C, tile_p), lambda i, j: (i, 0, j)),
            ],
        ),
        compiler_params=pltpu.CompilerParams(
            dimension_semantics=("parallel", "parallel"),
            vmem_limit_bytes=vmem_limit),
    )(db, bboxes_in, scores_in)

    if channel_last:
        # Optional glue transpose to match the PyTorch [N, P, 4]/[N, P, C].
        return jnp.transpose(out_bx, (0, 2, 1)), jnp.transpose(out_pr, (0, 2, 1))
    return out_bx, out_pr


def scale_back_batch_ref(bboxes_in, scores_in, dboxes_xywh,
                         scale_xy=0.1, scale_wh=0.2):
    """Pure-JAX reference of the PyTorch scale_back_batch (channel-first)."""
    b = bboxes_in.astype(jnp.float32)                              # [N, 4, P]
    s = scores_in.astype(jnp.float32)                              # [N, C, P]
    db = jnp.transpose(dboxes_xywh[0], (1, 0)).astype(jnp.float32)  # [4, P]
    xy = scale_xy * b[:, 0:2, :] * db[2:4, :] + db[0:2, :]
    wh = jnp.exp(scale_wh * b[:, 2:4, :]) * db[2:4, :]
    boxes = jnp.concatenate([xy - 0.5 * wh, xy + 0.5 * wh], axis=1)  # ltrb
    probs = jax.nn.softmax(s, axis=1)
    return boxes, probs


if __name__ == "__main__":
    key = jax.random.PRNGKey(0)
    k1, k2, k3, k4 = jax.random.split(key, 4)

    N, C, P = 2, 8, 256          # batch, num_classes (incl. background), priors
    scale_xy, scale_wh = 0.1, 0.2

    def make_dboxes(num_priors):
        # Deterministic synthetic default boxes in xywh, shaped [1, P, 4]
        # (stand-in for dboxes('xywh').unsqueeze(0)); centers/sizes in (0, 1).
        idx = jnp.arange(num_priors, dtype=jnp.float32)
        cx = (idx % 16 + 0.5) / 16.0
        cy = ((idx // 16) % 16 + 0.5) / 16.0
        w = 0.1 + 0.05 * (idx % 4)
        h = 0.1 + 0.05 * ((idx // 4) % 4)
        return jnp.stack([cx, cy, w, h], axis=-1)[None]            # [1, P, 4]

    dboxes_xywh = make_dboxes(P)
    bboxes_in = jax.random.normal(k1, (N, 4, P), dtype=jnp.float32)
    scores_in = jax.random.normal(k2, (N, C, P), dtype=jnp.float32)

    # ---- f32 path ----
    boxes, probs = scale_back_batch_pallas(
        bboxes_in, scores_in, dboxes_xywh, scale_xy, scale_wh)
    boxes, probs = jax.block_until_ready((boxes, probs))
    boxes_ref, probs_ref = scale_back_batch_ref(
        bboxes_in, scores_in, dboxes_xywh, scale_xy, scale_wh)
    assert boxes.shape == (N, 4, P) and probs.shape == (N, C, P)
    assert boxes.dtype == jnp.float32 and probs.dtype == jnp.float32
    assert jnp.allclose(boxes, boxes_ref, atol=1e-5, rtol=1e-5)
    assert jnp.allclose(probs, probs_ref, atol=1e-5, rtol=1e-5)

    # ---- bf16 path: native-dtype DMA in AND out (f32 math in-kernel) ----
    bboxes_bf = bboxes_in.astype(jnp.bfloat16)
    scores_bf = scores_in.astype(jnp.bfloat16)
    boxes_bf, probs_bf = scale_back_batch_pallas(
        bboxes_bf, scores_bf, dboxes_xywh, scale_xy, scale_wh)
    boxes_bf, probs_bf = jax.block_until_ready((boxes_bf, probs_bf))
    assert boxes_bf.dtype == jnp.bfloat16 and probs_bf.dtype == jnp.bfloat16
    boxes_bf_ref, probs_bf_ref = scale_back_batch_ref(
        bboxes_bf, scores_bf, dboxes_xywh, scale_xy, scale_wh)
    assert jnp.allclose(boxes_bf.astype(jnp.float32), boxes_bf_ref,
                        atol=2e-2, rtol=2e-2)
    assert jnp.allclose(probs_bf.astype(jnp.float32), probs_bf_ref,
                        atol=2e-2, rtol=2e-2)

    # ---- ragged-P path (P not a multiple of 128): cdiv grid masks the edge ----
    Pr = 456
    dboxes_r = make_dboxes(Pr)
    bboxes_r = jax.random.normal(k3, (N, 4, Pr), dtype=jnp.float32)
    scores_r = jax.random.normal(k4, (N, C, Pr), dtype=jnp.float32)
    boxes_r, probs_r = scale_back_batch_pallas(
        bboxes_r, scores_r, dboxes_r, scale_xy, scale_wh)
    boxes_r, probs_r = jax.block_until_ready((boxes_r, probs_r))
    boxes_r_ref, probs_r_ref = scale_back_batch_ref(
        bboxes_r, scores_r, dboxes_r, scale_xy, scale_wh)
    assert jnp.allclose(boxes_r, boxes_r_ref, atol=1e-5, rtol=1e-5)
    assert jnp.allclose(probs_r, probs_r_ref, atol=1e-5, rtol=1e-5)

    print("KERNEL_OK")
</pallas_src>

<mosaic_0001>
module attributes {stable_mosaic.version = 11 : i64} {
  func.func @_postprocess_kernel(%arg0: i32, %arg1: i32, %arg2: memref<4x128xf32, #tpu.memory_space<vmem>>, %arg3: memref<2x4x128xf32, #tpu.memory_space<vmem>>, %arg4: memref<2x8x128xf32, #tpu.memory_space<vmem>>, %arg5: memref<2x4x128xf32, #tpu.memory_space<vmem>>, %arg6: memref<2x8x128xf32, #tpu.memory_space<vmem>>) attributes {dimension_semantics = [#tpu.dimension_semantics<parallel>, #tpu.dimension_semantics<parallel>], iteration_bounds = array<i64: 1, 2>, scalar_prefetch = 0 : i64, scratch_operands = 0 : i64, tpu.core_type = #tpu.core_type<tc>, window_params = [{transform_indices = @transform_0, window_bounds = array<i64: 4, 128>}, {transform_indices = @transform_1, window_bounds = array<i64: 2, 4, 128>}, {transform_indices = @transform_2, window_bounds = array<i64: 2, 8, 128>}, {transform_indices = @transform_3, window_bounds = array<i64: 2, 4, 128>}, {transform_indices = @transform_4, window_bounds = array<i64: 2, 8, 128>}]} {
    %c0 = arith.constant 0 : index
    %c0_0 = arith.constant 0 : index
    %0 = vector.load %arg2[%c0, %c0_0] : memref<4x128xf32, #tpu.memory_space<vmem>>, vector<4x128xf32>
    %c0_1 = arith.constant 0 : index
    %c0_2 = arith.constant 0 : index
    %c0_3 = arith.constant 0 : index
    %1 = vector.load %arg3[%c0_1, %c0_2, %c0_3] : memref<2x4x128xf32, #tpu.memory_space<vmem>>, vector<2x4x128xf32>
    %2 = vector.extract_strided_slice %1 {offsets = [0, 0, 0], sizes = [2, 2, 128], strides = [1, 1, 1]} : vector<2x4x128xf32> to vector<2x2x128xf32>
    %cst = arith.constant 1.000000e-01 : f32
    %3 = vector.broadcast %cst : f32 to vector<2x2x128xf32>
    %4 = arith.mulf %3, %2 : vector<2x2x128xf32>
    %5 = vector.extract_strided_slice %0 {offsets = [2, 0], sizes = [2, 128], strides = [1, 1]} : vector<4x128xf32> to vector<2x128xf32>
    %6 = vector.shape_cast %5 : vector<2x128xf32> to vector<1x2x128xf32>
    %7 = vector.broadcast %6 : vector<1x2x128xf32> to vector<2x2x128xf32>
    %8 = arith.mulf %4, %7 : vector<2x2x128xf32>
    %9 = vector.extract_strided_slice %0 {offsets = [0, 0], sizes = [2, 128], strides = [1, 1]} : vector<4x128xf32> to vector<2x128xf32>
    %10 = vector.shape_cast %9 : vector<2x128xf32> to vector<1x2x128xf32>
    %11 = vector.broadcast %10 : vector<1x2x128xf32> to vector<2x2x128xf32>
    %12 = arith.addf %8, %11 : vector<2x2x128xf32>
    %13 = vector.extract_strided_slice %1 {offsets = [0, 2, 0], sizes = [2, 2, 128], strides = [1, 1, 1]} : vector<2x4x128xf32> to vector<2x2x128xf32>
    %cst_4 = arith.constant 2.000000e-01 : f32
    %14 = vector.broadcast %cst_4 : f32 to vector<2x2x128xf32>
    %15 = arith.mulf %14, %13 : vector<2x2x128xf32>
    %16 = math.exp %15 : vector<2x2x128xf32>
    %17 = vector.extract_strided_slice %0 {offsets = [2, 0], sizes = [2, 128], strides = [1, 1]} : vector<4x128xf32> to vector<2x128xf32>
    %18 = vector.shape_cast %17 : vector<2x128xf32> to vector<1x2x128xf32>
    %19 = vector.broadcast %18 : vector<1x2x128xf32> to vector<2x2x128xf32>
    %20 = arith.mulf %16, %19 : vector<2x2x128xf32>
    %cst_5 = arith.constant 5.000000e-01 : f32
    %21 = vector.broadcast %cst_5 : f32 to vector<2x2x128xf32>
    %22 = arith.mulf %21, %20 : vector<2x2x128xf32>
    %23 = arith.subf %12, %22 : vector<2x2x128xf32>
    %c0_6 = arith.constant 0 : index
    %c0_7 = arith.constant 0 : index
    %c0_8 = arith.constant 0 : index
    %24 = vector.load %arg5[%c0_6, %c0_7, %c0_8] : memref<2x4x128xf32, #tpu.memory_space<vmem>>, vector<2x2x128xf32>
    tpu.vector_store %arg5[%c0_6, %c0_7, %c0_8], %23 {strides = array<i32>} : memref<2x4x128xf32, #tpu.memory_space<vmem>>, vector<2x2x128xf32>,
    %cst_9 = arith.constant 5.000000e-01 : f32
    %25 = vector.broadcast %cst_9 : f32 to vector<2x2x128xf32>
    %26 = arith.mulf %25, %20 : vector<2x2x128xf32>
    %27 = arith.addf %12, %26 : vector<2x2x128xf32>
    %c0_10 = arith.constant 0 : index
    %c2 = arith.constant 2 : index
    %c0_11 = arith.constant 0 : index
    %28 = vector.load %arg5[%c0_10, %c2, %c0_11] : memref<2x4x128xf32, #tpu.memory_space<vmem>>, vector<2x2x128xf32>
    tpu.vector_store %arg5[%c0_10, %c2, %c0_11], %27 {strides = array<i32>} : memref<2x4x128xf32, #tpu.memory_space<vmem>>, vector<2x2x128xf32>,
    %c0_12 = arith.constant 0 : index
    %c0_13 = arith.constant 0 : index
    %c0_14 = arith.constant 0 : index
    %29 = vector.load %arg4[%c0_12, %c0_13, %c0_14] : memref<2x8x128xf32, #tpu.memory_space<vmem>>, vector<2x8x128xf32>
    %cst_15 = arith.constant dense<0xFF800000> : vector<2x128xf32>
    %30 = vector.multi_reduction <maximumf>, %29, %cst_15 [1] : vector<2x8x128xf32> to vector<2x128xf32>
    %31 = vector.shape_cast %30 : vector<2x128xf32> to vector<2x1x128xf32>
    %32 = vector.broadcast %31 : vector<2x1x128xf32> to vector<2x8x128xf32>
    %33 = arith.subf %29, %32 : vector<2x8x128xf32>
    %34 = math.exp %33 : vector<2x8x128xf32>
    %cst_16 = arith.constant dense<0.000000e+00> : vector<2x128xf32>
    %35 = vector.multi_reduction <add>, %34, %cst_16 [1] : vector<2x8x128xf32> to vector<2x128xf32>
    %36 = vector.shape_cast %35 : vector<2x128xf32> to vector<2x1x128xf32>
    %37 = tpu.reciprocal %36 : vector<2x1x128xf32> -> vector<2x1x128xf32>
    %38 = vector.broadcast %37 : vector<2x1x128xf32> to vector<2x8x128xf32>
    %39 = arith.mulf %34, %38 : vector<2x8x128xf32>
    %c0_17 = arith.constant 0 : index
    %c0_18 = arith.constant 0 : index
    %c0_19 = arith.constant 0 : index
    %40 = vector.load %arg6[%c0_17, %c0_18, %c0_19] : memref<2x8x128xf32, #tpu.memory_space<vmem>>, vector<2x8x128xf32>
    tpu.vector_store %arg6[%c0_17, %c0_18, %c0_19], %39 {strides = array<i32>} : memref<2x8x128xf32, #tpu.memory_space<vmem>>, vector<2x8x128xf32>,
    return
  }
  func.func @transform_0(%arg0: i32, %arg1: i32) -> (i32, i32) {
    %c0_i32 = arith.constant 0 : i32
    %c0_i32_0 = arith.constant 0 : i32
    return %c0_i32, %arg1 : i32, i32
  }
  func.func @transform_1(%arg0: i32, %arg1: i32) -> (i32, i32, i32) {
    %c0_i32 = arith.constant 0 : i32
    %c0_i32_0 = arith.constant 0 : i32
    return %arg0, %c0_i32, %arg1 : i32, i32, i32
  }
  func.func @transform_2(%arg0: i32, %arg1: i32) -> (i32, i32, i32) {
    %c0_i32 = arith.constant 0 : i32
    %c0_i32_0 = arith.constant 0 : i32
    return %arg0, %c0_i32, %arg1 : i32, i32, i32
  }
  func.func @transform_3(%arg0: i32, %arg1: i32) -> (i32, i32, i32) {
    %c0_i32 = arith.constant 0 : i32
    %c0_i32_0 = arith.constant 0 : i32
    return %arg0, %c0_i32, %arg1 : i32, i32, i32
  }
  func.func @transform_4(%arg0: i32, %arg1: i32) -> (i32, i32, i32) {
    %c0_i32 = arith.constant 0 : i32
    %c0_i32_0 = arith.constant 0 : i32
    return %arg0, %c0_i32, %arg1 : i32, i32, i32
  }
}

</mosaic_0001>

<llo_original>
// kernel: tpu_custom_call.1
$region0: #{tpu_custom_call.1}
  #allocation0 [shape = 'u32[]', space=smem, size = 0x4, offset = 0x4, fixed_abs, tag = 'smem constant byte address 0x4 - core index']
  #allocation1 [shape = 'u32[72,128]{1,0:T(1,128)}', space=vmem, size = 0x9000, scoped, tag = 'internal scratch']
  %s0 = inlined_call_operand.hbm [shape: f32[4,256], index: 0, kind: input, shape index: {}]
  %s1 = inlined_call_operand.hbm [shape: f32[2,4,256], index: 1, kind: input, shape index: {}]
  %s2 = inlined_call_operand.hbm [shape: f32[2,8,256], index: 2, kind: input, shape index: {}]
  %s3 = inlined_call_operand.hbm [shape: f32[2,4,256], index: 3, kind: output, shape index: {0}]
  %s4 = inlined_call_operand.hbm [shape: f32[2,8,256], index: 4, kind: output, shape index: {1}]
  %5 = xla_tuple %s3, %s4
  %s6 = sld [smem:[#allocation0]]
  $region65: #{tpu_custom_call.1} parent=0
    _
  %s8 = ssub.s32 1, %s6
  %s9 = scalar_select 0, %s8, %s6
  $region1: #{tpu_custom_call.1} parent=0
    #allocation2 [shape = 'u8[4096]{0}', space=vmem, size = 0x1000, scoped, tag = 'input window, operand 0']
    #allocation3 [shape = 's32[2]{0}', space=sflag, size = 0x8, scoped, tag = 'scoped memory for tpu_custom_call.1']
    #allocation4 [shape = 's32[2]{0}', space=sflag, size = 0x8, scoped, tag = 'scoped memory for tpu_custom_call.1']
    #allocation5 [shape = 'u8[8192]{0}', space=vmem, size = 0x2000, scoped, tag = 'input window, operand 1']
    #allocation6 [shape = 's32[2]{0}', space=sflag, size = 0x8, scoped, tag = 'scoped memory for tpu_custom_call.1']
    #allocation7 [shape = 'u8[16384]{0}', space=vmem, size = 0x4000, scoped, tag = 'input window, operand 2']
    #allocation8 [shape = 'u8[8192]{0}', space=vmem, size = 0x2000, scoped, tag = 'output window, operand 0']
    #allocation9 [shape = 'u8[16384]{0}', space=vmem, size = 0x4000, scoped, tag = 'output window, operand 1']
    #allocation10 [shape = 's32[2]{0}', space=sflag, size = 0x8, scoped, tag = 'scoped memory for tpu_custom_call.1']
    %10 = vsyncpa [#allocation3], 0
    %s11 = scalar_lea.sflag [#allocation3], 1
    %12 = vsyncpa %s11, 0
    %13 = vsyncpa [#allocation6], 0
    %s14 = scalar_lea.sflag [#allocation6], 1
    %15 = vsyncpa %s14, 0
    %16 = vsyncpa [#allocation4], 0
    %s17 = scalar_lea.sflag [#allocation4], 1
    %18 = vsyncpa %s17, 0
    %19 = vsyncpa [#allocation10], 0
    %s20 = scalar_lea.sflag [#allocation10], 1
    %21 = vsyncpa %s20, 0
    loop: start=0, step=1, limit=4
    $region2: #{tpu_custom_call.1} parent=1 // loop_pre_header
      _
    $region3: #{tpu_custom_call.1} parent=1 // loop_header
      %s23 = sphi 0, %s27
      %p24 = scmp.ge.s32.totalorder %s23, 4
      %s30 = sphi 0, %s42
      %s31 = sphi 0, %s38
      %s32 = sphi 0, %s30
      %s33 = sphi 0, %s31
      %s34 = sphi 0, %s32
      %s35 = sphi 0, %s33
      %s45 = sphi 0, %s47
      %s48 = sphi 0, %s45
      %s49 = sphi 0, %s48
      %s65 = sphi 0, %s49
      %s73 = sphi 0, %s75
      %s76 = sphi 0, %s73
      %s77 = sphi 0, %s76
      %s93 = sphi 0, %s77
      %s101 = sphi 0, %s103
      %s104 = sphi 0, %s101
      %s105 = sphi 0, %s104
      %s121 = sphi 0, %s105
      %s129 = sphi 0, %s131
      %s132 = sphi 0, %s129
      %s133 = sphi 0, %s132
      %s149 = sphi 0, %s133
      %s157 = sphi 0, %s159
      %s160 = sphi 0, %s157
      %s161 = sphi 0, %s160
      %s177 = sphi 0, %s161
    $region4: #{tpu_custom_call.1} parent=1 // loop_header_branch
      %26 = sbr.rel (%p24) target = $region8
    $region5: #{tpu_custom_call.1} parent=1 // loop_body
      %s28 = ssub.s32 %s23, 1
      %s29 = ssub.s32 %s23, 2
      %s36 = sadd.s32 1, %s31
      %p37 = scmp.ge.s32.totalorder %s36, 2
      %s38 = scalar_select %p37, 0, %s36
      %s39 = sadd.s32 1, %s30
      %s40 = scalar_select %p37, %s39, %s30
      %p41 = scmp.ge.s32.totalorder %s40, 1
      %s42 = scalar_select %p41, 0, %s40
      %s43 = ssub.s32 %s31, %s38
      %p44 = scmp.eq.s32.totalorder %s43, 0
      %s46 = sadd.s32 %s45, 1
      %s47 = scalar_select %p44, %s45, %s46
      %p50 = pneg %p44
      %p51 = scmp.eq.s32.totalorder %s23, 1
      %p52 = por %p50, %p51
      %p53 = scmp.ne.s32.totalorder %s45, %s48
      %p54 = scmp.eq.s32.totalorder %s23, 0
      %p55 = por %p53, %p54
      %p56 = scmp.ne.s32.totalorder %s45, %s48
      %p57 = scmp.eq.s32.totalorder %s28, 1
      %p58 = por %p56, %p57
      %p59 = scmp.ne.s32.totalorder %s48, %s49
      %p60 = scmp.eq.s32.totalorder %s28, 0
      %p61 = por %p59, %p60
      %p62 = scmp.ne.s32.totalorder %s48, %s49
      %p63 = scmp.eq.s32.totalorder %s29, 1
      %p64 = por %p62, %p63
      %p66 = scmp.ne.s32.totalorder %s49, %s65
      %p67 = scmp.eq.s32.totalorder %s29, 0
      %p68 = por %p66, %p67
      %s69 = ssub.s32 %s30, %s42
      %s70 = ssub.s32 %s31, %s38
      %s71 = sor.u32 %s69, %s70
      %p72 = scmp.eq.s32.totalorder %s71, 0
      %s74 = sadd.s32 %s73, 1
      %s75 = scalar_select %p72, %s73, %s74
      %p78 = pneg %p72
      %p79 = scmp.eq.s32.totalorder %s23, 1
      %p80 = por %p78, %p79
      %p81 = scmp.ne.s32.totalorder %s73, %s76
      %p82 = scmp.eq.s32.totalorder %s23, 0
      %p83 = por %p81, %p82
      %p84 = scmp.ne.s32.totalorder %s73, %s76
      %p85 = scmp.eq.s32.totalorder %s28, 1
      %p86 = por %p84, %p85
      %p87 = scmp.ne.s32.totalorder %s76, %s77
      %p88 = scmp.eq.s32.totalorder %s28, 0
      %p89 = por %p87, %p88
      %p90 = scmp.ne.s32.totalorder %s76, %s77
      %p91 = scmp.eq.s32.totalorder %s29, 1
      %p92 = por %p90, %p91
      %p94 = scmp.ne.s32.totalorder %s77, %s93
      %p95 = scmp.eq.s32.totalorder %s29, 0
      %p96 = por %p94, %p95
      %s97 = ssub.s32 %s30, %s42
      %s98 = ssub.s32 %s31, %s38
      %s99 = sor.u32 %s97, %s98
      %p100 = scmp.eq.s32.totalorder %s99, 0
      %s102 = sadd.s32 %s101, 1
      %s103 = scalar_select %p100, %s101, %s102
      %p106 = pneg %p100
      %p107 = scmp.eq.s32.totalorder %s23, 1
      %p108 = por %p106, %p107
      %p109 = scmp.ne.s32.totalorder %s101, %s104
      %p110 = scmp.eq.s32.totalorder %s23, 0
      %p111 = por %p109, %p110
      %p112 = scmp.ne.s32.totalorder %s101, %s104
      %p113 = scmp.eq.s32.totalorder %s28, 1
      %p114 = por %p112, %p113
      %p115 = scmp.ne.s32.totalorder %s104, %s105
      %p116 = scmp.eq.s32.totalorder %s28, 0
      %p117 = por %p115, %p116
      %p118 = scmp.ne.s32.totalorder %s104, %s105
      %p119 = scmp.eq.s32.totalorder %s29, 1
      %p120 = por %p118, %p119
      %p122 = scmp.ne.s32.totalorder %s105, %s121
      %p123 = scmp.eq.s32.totalorder %s29, 0
      %p124 = por %p122, %p123
      %s125 = ssub.s32 %s30, %s42
      %s126 = ssub.s32 %s31, %s38
      %s127 = sor.u32 %s125, %s126
      %p128 = scmp.eq.s32.totalorder %s127, 0
      %s130 = sadd.s32 %s129, 1
      %s131 = scalar_select %p128, %s129, %s130
      %p134 = pneg %p128
      %p135 = scmp.eq.s32.totalorder %s23, 1
      %p136 = por %p134, %p135
      %p137 = scmp.ne.s32.totalorder %s129, %s132
      %p138 = scmp.eq.s32.totalorder %s23, 0
      %p139 = por %p137, %p138
      %p140 = scmp.ne.s32.totalorder %s129, %s132
      %p141 = scmp.eq.s32.totalorder %s28, 1
      %p142 = por %p140, %p141
      %p143 = scmp.ne.s32.totalorder %s132, %s133
      %p144 = scmp.eq.s32.totalorder %s28, 0
      %p145 = por %p143, %p144
      %p146 = scmp.ne.s32.totalorder %s132, %s133
      %p147 = scmp.eq.s32.totalorder %s29, 1
      %p148 = por %p146, %p147
      %p150 = scmp.ne.s32.totalorder %s133, %s149
      %p151 = scmp.eq.s32.totalorder %s29, 0
      %p152 = por %p150, %p151
      %s153 = ssub.s32 %s30, %s42
      %s154 = ssub.s32 %s31, %s38
      %s155 = sor.u32 %s153, %s154
      %p156 = scmp.eq.s32.totalorder %s155, 0
      %s158 = sadd.s32 %s157, 1
      %s159 = scalar_select %p156, %s157, %s158
      %p162 = pneg %p156
      %p163 = scmp.eq.s32.totalorder %s23, 1
      %p164 = por %p162, %p163
      %p165 = scmp.ne.s32.totalorder %s157, %s160
      %p166 = scmp.eq.s32.totalorder %s23, 0
      %p167 = por %p165, %p166
      %p168 = scmp.ne.s32.totalorder %s157, %s160
      %p169 = scmp.eq.s32.totalorder %s28, 1
      %p170 = por %p168, %p169
      %p171 = scmp.ne.s32.totalorder %s160, %s161
      %p172 = scmp.eq.s32.totalorder %s28, 0
      %p173 = por %p171, %p172
      %p174 = scmp.ne.s32.totalorder %s160, %s161
      %p175 = scmp.eq.s32.totalorder %s29, 1
      %p176 = por %p174, %p175
      %p178 = scmp.ne.s32.totalorder %s161, %s177
      %p179 = scmp.eq.s32.totalorder %s29, 0
      %p180 = por %p178, %p179
      %p181 = scmp.le.s32.totalorder 1, %s23
      %p182 = scmp.lt.s32.totalorder %s23, 3
      %p183 = pnand %p181, %p182
      %p184 = pneg %p183
      // Predicated region
      $region9: #{tpu_custom_call.1} parent=5 // pred_check
        _
      $region10: #{tpu_custom_call.1} parent=5 // pred_check_branch
        %186 = sbr.rel (%p183) target = $region12
      $region11: #{tpu_custom_call.1} parent=5 // pred_region
        %s187 = ssub.s32 %s23, 1
      $region12: #{tpu_custom_call.1} parent=5 // pred_fallthru
        _
      %p188 = scmp.lt.s32.totalorder %s23, 2
      // Predicated region
      $region13: #{tpu_custom_call.1} parent=5 // pred_check
        %p189 = pneg %p188
      $region14: #{tpu_custom_call.1} parent=5 // pred_check_branch
        %191 = sbr.rel (%p189) target = $region16
      $region15: #{tpu_custom_call.1} parent=5 // pred_region
        // Predicated region
        $region17: #{tpu_custom_call.1} parent=15 // pred_check
          %p192 = pneg %p55
        $region18: #{tpu_custom_call.1} parent=15 // pred_check_branch
          %194 = sbr.rel (%p192) target = $region20
        $region19: #{tpu_custom_call.1} parent=15 // pred_region
          %s195 = sand.u32 %s45, 1
          %s196 = scalar_lea.sflag [#allocation3], %s195
          %s197 = sand.u32 %s45, 1
          %s198 = smul.addr %s197, 4
          %s199 = scalar_lea.vmem [#allocation2], %s198
          %201 = vsyncadd %s196, 0
          %s202 = smul.addr %s31, 4
          %s203 = scalar_lea.hbm %s0, %s202
          %s205 = sshll.u32 %s203, 4
          %s206 = int_to_ptr.hbm [resolvable:$true] %s205
          %s207 = sshll.u32 %s199, 4
          %s208 = int_to_ptr.vmem [resolvable:$true] %s207
          %210 = dma.hbm_to_vmem [thread:$0]  %s206, 64, %s208, %s196
        $region20: #{tpu_custom_call.1} parent=15 // pred_fallthru
          _
        // Predicated region
        $region21: #{tpu_custom_call.1} parent=15 // pred_check
          %p211 = pneg %p83
        $region22: #{tpu_custom_call.1} parent=15 // pred_check_branch
          %213 = sbr.rel (%p211) target = $region24
        $region23: #{tpu_custom_call.1} parent=15 // pred_region
          %s214 = sand.u32 %s23, 1
          %s215 = scalar_lea.sflag [#allocation6], %s214
          %s216 = sand.u32 %s73, 1
          %s217 = smul.addr %s216, 8
          %s218 = scalar_lea.vmem [#allocation5], %s217
          %s219 = smul.u32 2, %s30
          %221 = vsyncadd %s215, 0
          %s222 = smul.addr %s219, 2
          %s223 = sadd.s32 %s31, %s222
          %s224 = smul.addr %s223, 4
          %s225 = scalar_lea.hbm %s1, %s224
          %s226 = sshll.u32 %s225, 4
          %s227 = int_to_ptr.hbm [resolvable:$true] %s226
          %s228 = sshll.u32 %s218, 4
          %s229 = int_to_ptr.vmem [resolvable:$true] %s228
          %234 = dma.hbm_to_vmem [thread:$0]  %s227, 128, %s229, %s215, 128, 64, 4
        $region24: #{tpu_custom_call.1} parent=15 // pred_fallthru
          _
        // Predicated region
        $region25: #{tpu_custom_call.1} parent=15 // pred_check
          %p235 = pneg %p111
        $region26: #{tpu_custom_call.1} parent=15 // pred_check_branch
          %237 = sbr.rel (%p235) target = $region28
        $region27: #{tpu_custom_call.1} parent=15 // pred_region
          %s238 = sand.u32 %s23, 1
          %s239 = scalar_lea.sflag [#allocation6], %s238
          %s240 = sand.u32 %s101, 1
          %s241 = smul.addr %s240, 16
          %s242 = scalar_lea.vmem [#allocation7], %s241
          %s243 = smul.u32 2, %s30
          %245 = vsyncadd %s239, 0
          %s246 = smul.addr %s243, 2
          %s247 = sadd.s32 %s31, %s246
          %s248 = smul.addr %s247, 8
          %s249 = scalar_lea.hbm %s2, %s248
          %s250 = sshll.u32 %s249, 4
          %s251 = int_to_ptr.hbm [resolvable:$true] %s250
          %s252 = sshll.u32 %s242, 4
          %s253 = int_to_ptr.vmem [resolvable:$true] %s252
          %258 = dma.hbm_to_vmem [thread:$0]  %s251, 256, %s253, %s239, 256, 128, 8
        $region28: #{tpu_custom_call.1} parent=15 // pred_fallthru
          _
      $region16: #{tpu_custom_call.1} parent=5 // pred_fallthru
        _
      %p259 = scmp.le.s32.totalorder 1, %s23
      %p260 = scmp.lt.s32.totalorder %s23, 3
      %p261 = pnand %p259, %p260
      %p262 = pneg %p261
      // Predicated region
      $region29: #{tpu_custom_call.1} parent=5 // pred_check
        _
      $region30: #{tpu_custom_call.1} parent=5 // pred_check_branch
        %264 = sbr.rel (%p261) target = $region32
      $region31: #{tpu_custom_call.1} parent=5 // pred_region
        %s265 = ssub.s32 %s23, 1
        %s266 = sand.u32 %s48, 1
        %s267 = scalar_lea.sflag [#allocation3], %s266
        %s268 = sand.u32 %s48, 1
        %s269 = smul.addr %s268, 4
        %s270 = scalar_lea.vmem [#allocation2], %s269
        // Predicated region
        $region33: #{tpu_custom_call.1} parent=31 // pred_check
          %p271 = pneg %p61
        $region34: #{tpu_custom_call.1} parent=31 // pred_check_branch
          %273 = sbr.rel (%p271) target = $region36
        $region35: #{tpu_custom_call.1} parent=31 // pred_region
          %275 = dma.done %s267, 64
        $region36: #{tpu_custom_call.1} parent=31 // pred_fallthru
          _
        %s276 = sand.u32 %s28, 1
        %s277 = scalar_lea.sflag [#allocation6], %s276
        %s278 = sand.u32 %s76, 1
        %s279 = smul.addr %s278, 8
        %s280 = scalar_lea.vmem [#allocation5], %s279
        // Predicated region
        $region37: #{tpu_custom_call.1} parent=31 // pred_check
          %p281 = pneg %p89
        $region38: #{tpu_custom_call.1} parent=31 // pred_check_branch
          %283 = sbr.rel (%p281) target = $region40
        $region39: #{tpu_custom_call.1} parent=31 // pred_region
          %285 = dma.done %s277, 128
        $region40: #{tpu_custom_call.1} parent=31 // pred_fallthru
          _
        %s286 = sand.u32 %s28, 1
        %s287 = scalar_lea.sflag [#allocation6], %s286
        %s288 = sand.u32 %s104, 1
        %s289 = smul.addr %s288, 16
        %s290 = scalar_lea.vmem [#allocation7], %s289
        // Predicated region
        $region41: #{tpu_custom_call.1} parent=31 // pred_check
          %p291 = pneg %p117
        $region42: #{tpu_custom_call.1} parent=31 // pred_check_branch
          %293 = sbr.rel (%p291) target = $region44
        $region43: #{tpu_custom_call.1} parent=31 // pred_region
          %295 = dma.done %s287, 256
        $region44: #{tpu_custom_call.1} parent=31 // pred_fallthru
          _
        %s296 = sand.u32 %s48, 1
        %s297 = scalar_lea.sflag [#allocation3], %s296
        %s298 = sand.u32 %s48, 1
        %s299 = smul.addr %s298, 4
        %s300 = scalar_lea.vmem [#allocation2], %s299
        %p301 = pneg %p61
        %p302 = pneg %p58
        %s303 = sand.u32 %s28, 1
        %s304 = scalar_lea.sflag [#allocation6], %s303
        %s305 = sand.u32 %s76, 1
        %s306 = smul.addr %s305, 8
        %s307 = scalar_lea.vmem [#allocation5], %s306
        %p308 = pneg %p89
        %p309 = pneg %p86
        %s310 = sand.u32 %s28, 1
        %s311 = scalar_lea.sflag [#allocation6], %s310
        %s312 = sand.u32 %s104, 1
        %s313 = smul.addr %s312, 16
        %s314 = scalar_lea.vmem [#allocation7], %s313
        %p315 = pneg %p117
        %p316 = pneg %p114
        %p317 = pneg %p145
        %p318 = pneg %p142
        %s319 = sand.u32 %s132, 1
        %s320 = scalar_lea.sflag [#allocation4], %s319
        %s321 = sand.u32 %s132, 1
        %s322 = smul.addr %s321, 8
        %s323 = scalar_lea.vmem [#allocation8], %s322
        %p324 = pneg %p173
        %p325 = pneg %p170
        %s326 = sand.u32 %s160, 1
        %s327 = scalar_lea.sflag [#allocation10], %s326
        %s328 = sand.u32 %s160, 1
        %s329 = smul.addr %s328, 16
        %s330 = scalar_lea.vmem [#allocation9], %s329
        %s331 = smul.u32 2, %s32
        %s332 = smul.u32 2, %s32
        %s333 = smul.u32 2, %s32
        %s334 = smul.u32 2, %s32
        %v335 = vld [vmem:[%s270] sm:$0xf]
        %v336 = vld [vmem:[%s280] sm:$0xf]
        %v337 = vld [vmem:[%s280 + $0x4] sm:$0xf]
        %v338 = vmul.f32 %v336, 0.1
        %v339 = vmul.f32 %v337, 0.1
        %v341 = vrot.slane %v335, 2
        %v343 = vmul.f32 %v338, %v341
        %v344 = vmul.f32 %v339, %v341
        %v345 = vadd.f32 %v343, %v335
        %v346 = vadd.f32 %v344, %v335
        %v347 = vmul.f32 %v336, 0.2
        %v348 = vmul.f32 %v337, 0.2
        %v349 = vmul.f32 %v347, 1.442695
        %v350 = vpow.pop %v349
        %v351 = vmul.f32 %v348, 1.442695
        %v352 = vpow.pop %v351
        %v353 = vmul.f32 %v350, %v335
        %v354 = vmul.f32 %v352, %v335
        %v355 = vmul.f32 %v353, 0.5
        %v356 = vmul.f32 %v354, 0.5
        %v359 = vrot.slane %v355, 2
        %v360 = vrot.slane %v356, 2
        %v363 = vsub.f32 %v345, %v359
        %v364 = vsub.f32 %v346, %v360
        %365 = vst [vmem:[%s323] sm:$0x3] %v363
        %366 = vst [vmem:[%s323 + $0x4] sm:$0x3] %v364
        %v367 = vadd.f32 %v345, %v359
        %v368 = vadd.f32 %v346, %v360
        %369 = vst [vmem:[%s323 + $0x2] sm:$0x3] %v367
        %370 = vst [vmem:[%s323 + $0x6] sm:$0x3] %v368
        %v371 = vld [vmem:[%s290] sm:$0xff]
        %v372 = vld [vmem:[%s290 + $0x8] sm:$0xff]
        %v373 = vrot.slane %v371, 4
        %v374 = vmax.f32 %v371, %v373
        %v375 = vrot.slane %v374, 2
        %v376 = vmax.f32 %v374, %v375
        %v377 = vrot.slane %v376, 1
        %v378 = vmax.f32 %v376, %v377
        %v379 = vrot.slane %v372, 4
        %v380 = vmax.f32 %v372, %v379
        %v381 = vrot.slane %v380, 2
        %v382 = vmax.f32 %v380, %v381
        %v383 = vrot.slane %v382, 1
        %v384 = vmax.f32 %v382, %v383
        %v385 = vsub.f32 %v371, %v378
        %v386 = vsub.f32 %v372, %v384
        %v387 = vmul.f32 %v385, 1.442695
        %v388 = vpow.pop %v387
        %v389 = vmul.f32 %v386, 1.442695
        %v390 = vpow.pop %v389
        %v391 = vrot.slane %v388, 4
        %v392 = vadd.f32 %v388, %v391
        %v393 = vrot.slane %v392, 2
        %v394 = vadd.f32 %v392, %v393
        %v395 = vrot.slane %v394, 1
        %v396 = vadd.f32 %v394, %v395
        %v397 = vrot.slane %v390, 4
        %v398 = vadd.f32 %v390, %v397
        %v399 = vrot.slane %v398, 2
        %v400 = vadd.f32 %v398, %v399
        %v401 = vrot.slane %v400, 1
        %v402 = vadd.f32 %v400, %v401
        %v403 = vrcp.pop %v396
        %v404 = vmul.f32 %v396, %v403
        %v405 = vsub.f32 1.0, %v404
        %v406 = vmul.f32 %v403, %v405
        %v407 = vadd.f32 %v403, %v406
        %vm408 = vweird.f32 %v396
        %vm409 = vweird.f32 %v403
        %vm410 = vmor %vm408, %vm409
        %v411 = vsel %vm410, %v403, %v407
        %v412 = vand.u32 2147483647, %v396
        %vm413 = vcmp.eq.f32.partialorder %v412, 8.507059e+37
        %v414 = vand.u32 %v396, 2147483648
        %v415 = vor.u32 1.1754944e-38, %v414
        %v416 = vsel %vm413, %v415, %v411
        %v417 = vrcp.pop %v402
        %v418 = vmul.f32 %v402, %v417
        %v419 = vsub.f32 1.0, %v418
        %v420 = vmul.f32 %v417, %v419
        %v421 = vadd.f32 %v417, %v420
        %vm422 = vweird.f32 %v402
        %vm423 = vweird.f32 %v417
        %vm424 = vmor %vm422, %vm423
        %v425 = vsel %vm424, %v417, %v421
        %v426 = vand.u32 2147483647, %v402
        %vm427 = vcmp.eq.f32.partialorder %v426, 8.507059e+37
        %v428 = vand.u32 %v402, 2147483648
        %v429 = vor.u32 1.1754944e-38, %v428
        %v430 = vsel %vm427, %v429, %v425
        %v431 = vmul.f32 %v388, %v416
        %v432 = vmul.f32 %v390, %v430
        %433 = vst [vmem:[%s330] sm:$0xff] %v431
        %434 = vst [vmem:[%s330 + $0x8] sm:$0xff] %v432
        %s435 = sand.u32 %s132, 1
        %s436 = scalar_lea.sflag [#allocation4], %s435
        %s437 = sand.u32 %s132, 1
        %s438 = smul.addr %s437, 8
        %s439 = scalar_lea.vmem [#allocation8], %s438
        %s440 = sand.u32 %s160, 1
        %s441 = scalar_lea.sflag [#allocation10], %s440
        %s442 = sand.u32 %s160, 1
        %s443 = smul.addr %s442, 16
        %s444 = scalar_lea.vmem [#allocation9], %s443
        // Predicated region
        $region45: #{tpu_custom_call.1} parent=31 // pred_check
          %p445 = pneg %p142
        $region46: #{tpu_custom_call.1} parent=31 // pred_check_branch
          %447 = sbr.rel (%p445) target = $region48
        $region47: #{tpu_custom_call.1} parent=31 // pred_region
          %s448 = smul.u32 2, %s32
          %450 = vsyncadd %s436, 0
          %s451 = smul.addr %s448, 2
          %s452 = sadd.s32 %s33, %s451
          %s453 = smul.addr %s452, 4
          %s454 = scalar_lea.hbm %s3, %s453
          %s455 = sshll.u32 %s439, 4
          %s456 = int_to_ptr.vmem [resolvable:$true] %s455
          %s457 = sshll.u32 %s454, 4
          %s458 = int_to_ptr.hbm [resolvable:$true] %s457
          %463 = dma.vmem_to_hbm [thread:$0]  %s456, 128, %s458, %s436, 64, 128, 4
        $region48: #{tpu_custom_call.1} parent=31 // pred_fallthru
          _
        // Predicated region
        $region49: #{tpu_custom_call.1} parent=31 // pred_check
          %p464 = pneg %p170
        $region50: #{tpu_custom_call.1} parent=31 // pred_check_branch
          %466 = sbr.rel (%p464) target = $region52
        $region51: #{tpu_custom_call.1} parent=31 // pred_region
          %s467 = smul.u32 2, %s32
          %469 = vsyncadd %s441, 0
          %s470 = smul.addr %s467, 2
          %s471 = sadd.s32 %s33, %s470
          %s472 = smul.addr %s471, 8
          %s473 = scalar_lea.hbm %s4, %s472
          %s474 = sshll.u32 %s444, 4
          %s475 = int_to_ptr.vmem [resolvable:$true] %s474
          %s476 = sshll.u32 %s473, 4
          %s477 = int_to_ptr.hbm [resolvable:$true] %s476
          %482 = dma.vmem_to_hbm [thread:$0]  %s475, 256, %s477, %s441, 128, 256, 8
        $region52: #{tpu_custom_call.1} parent=31 // pred_fallthru
          _
      $region32: #{tpu_custom_call.1} parent=5 // pred_fallthru
        _
      %p483 = scmp.le.s32.totalorder 2, %s23
      // Predicated region
      $region53: #{tpu_custom_call.1} parent=5 // pred_check
        %p484 = pneg %p483
      $region54: #{tpu_custom_call.1} parent=5 // pred_check_branch
        %486 = sbr.rel (%p484) target = $region56
      $region55: #{tpu_custom_call.1} parent=5 // pred_region
        %s487 = ssub.s32 %s23, 2
        // Predicated region
        $region57: #{tpu_custom_call.1} parent=55 // pred_check
          %p488 = pneg %p148
        $region58: #{tpu_custom_call.1} parent=55 // pred_check_branch
          %490 = sbr.rel (%p488) target = $region60
        $region59: #{tpu_custom_call.1} parent=55 // pred_region
          %s491 = sand.u32 %s133, 1
          %s492 = scalar_lea.sflag [#allocation4], %s491
          %s493 = sand.u32 %s133, 1
          %s494 = smul.addr %s493, 8
          %s495 = scalar_lea.vmem [#allocation8], %s494
          %497 = dma.done %s492, 128
        $region60: #{tpu_custom_call.1} parent=55 // pred_fallthru
          _
        // Predicated region
        $region61: #{tpu_custom_call.1} parent=55 // pred_check
          %p498 = pneg %p176
        $region62: #{tpu_custom_call.1} parent=55 // pred_check_branch
          %500 = sbr.rel (%p498) target = $region64
        $region63: #{tpu_custom_call.1} parent=55 // pred_region
          %s501 = sand.u32 %s161, 1
          %s502 = scalar_lea.sflag [#allocation10], %s501
          %s503 = sand.u32 %s161, 1
          %s504 = smul.addr %s503, 16
          %s505 = scalar_lea.vmem [#allocation9], %s504
          %507 = dma.done %s502, 256
        $region64: #{tpu_custom_call.1} parent=55 // pred_fallthru
          _
      $region56: #{tpu_custom_call.1} parent=5 // pred_fallthru
        _
    $region6: #{tpu_custom_call.1} parent=1 // loop_footer
      %s27 = sadd.s32 1, %s23
    $region7: #{tpu_custom_call.1} parent=1 // loop_footer_branch
      %22 = sbr.rel target = $region3
    $region8: #{tpu_custom_call.1} parent=1 // loop_exit
      _
    %508 = vsyncpa [#allocation3], 1
    %s509 = scalar_lea.sflag [#allocation3], 1
    %510 = vsyncpa %s509, 1
    %511 = vsyncpa [#allocation6], 1
    %s512 = scalar_lea.sflag [#allocation6], 1
    %513 = vsyncpa %s512, 1
    %514 = vsyncpa [#allocation4], 1
    %s515 = scalar_lea.sflag [#allocation4], 1
    %516 = vsyncpa %s515, 1
    %517 = vsyncpa [#allocation10], 1
    %s518 = scalar_lea.sflag [#allocation10], 1
    %519 = vsyncpa %s518, 1

</llo_original>
